<compile_context>
chip_gen: v5e
topology: v5e:2x2
jax: 0.10.0
libtpu: 0.0.40
codegen_flags: <defaults>
</compile_context>

<pallas_src>
import functools

import jax
import jax.numpy as jnp
from jax.experimental import pallas as pl
from jax.experimental.pallas import tpu as pltpu


def _generic_loss_kernel(x_ref, tgt_ref, *rest, n_rows, n_classes,
                         tile_n, tile_c, ignore_index, reduction):
    if reduction == 'none':
        out_ref, m_sc, l_sc, picked_sc = rest
    else:
        psum_ref, pcnt_ref, m_sc, l_sc, picked_sc = rest

    i = pl.program_id(0)              # row-tile index ("parallel")
    j = pl.program_id(1)              # class-chunk index (reduction axis, last)
    nj = pl.num_programs(1)

    # ---- per-row-tile online-logsumexp state: re-init at each new row tile --
    @pl.when(j == 0)
    def _():
        m_sc[...] = jnp.full_like(m_sc, -jnp.inf)
        l_sc[...] = jnp.zeros_like(l_sc)
        picked_sc[...] = jnp.zeros_like(picked_sc)

    x_raw = x_ref[...]                                   # raw dtype (bf16 stays packed)
    tgt = tgt_ref[...]                                   # (tile_n, 1) int32

    # Constant lane iota (same every grid step); the chunk offset j*tile_c is
    # folded into the scalar / (tile_n,1) side of each comparison instead of
    # a full-tile add.
    lane_ids = jax.lax.broadcasted_iota(jnp.int32, (tile_n, tile_c), 1)

    # x[row, target[row]] for targets falling inside this class chunk.
    # Select + lane-sum stay in the input dtype (packed bf16 on v6e/v7x);
    # exactly one lane per row can be non-zero, so the sum is exact, and only
    # the (tile_n, 1) result is upcast before accumulation.
    pick = lane_ids == (tgt - j * tile_c)
    picked_sc[...] += jnp.sum(jnp.where(pick, x_raw, 0),
                              axis=1, keepdims=True).astype(jnp.float32)

    def _lse_update(xm):
        # Online logsumexp over the class axis (flash-attention style).
        chunk_max = jnp.max(xm, axis=1, keepdims=True)
        m_new = jnp.maximum(m_sc[...], chunk_max)
        l_sc[...] = (l_sc[...] * jnp.exp(m_sc[...] - m_new)
                     + jnp.sum(jnp.exp(xm - m_new), axis=1, keepdims=True))
        m_sc[...] = m_new

    if n_classes % tile_c != 0:
        # Ragged last class chunk: padded columns must be -inf before the max
        # (they may hold arbitrary data).  Steady-state chunks take the
        # unmasked hot path and pay no extra VPU ops.
        @pl.when(j != nj - 1)
        def _():
            _lse_update(x_raw.astype(jnp.float32))

        @pl.when(j == nj - 1)
        def _():
            col_ok = lane_ids < (n_classes - j * tile_c)
            _lse_update(jnp.where(col_ok, x_raw, -jnp.inf).astype(jnp.float32))
    else:
        _lse_update(x_raw.astype(jnp.float32))

    # ---- finalize this row tile on the last class chunk ---------------------
    @pl.when(j == nj - 1)
    def _():
        loss = m_sc[...] + jnp.log(l_sc[...]) - picked_sc[...]   # (tile_n, 1)

        # Ragged last row tile: over-read rows can hold garbage (even NaN/Inf)
        # but jnp.where selects 0.0 for them elementwise, so nothing leaks
        # into the stored / accumulated loss.
        row_ids = i * tile_n + jax.lax.broadcasted_iota(
            jnp.int32, (tile_n, 1), 0)
        valid = row_ids < n_rows

        if ignore_index >= 0:
            # _GenericLoss only honours ignore_index when it is >= 0.
            ignored = tgt == ignore_index
            loss = jnp.where(ignored, 0.0, loss)               # masked_fill_
            counted = jnp.logical_and(valid, jnp.logical_not(ignored))
        else:
            counted = valid

        loss = jnp.where(valid, loss, 0.0)

        if reduction == 'none':
            out_ref[...] = loss
        else:
            # Per-row-tile partials; combined in the wrapper.  Keeps the row
            # axis "parallel" so both v7x TensorCores stay busy.
            psum_ref[...] = jnp.sum(loss, keepdims=True)
            pcnt_ref[...] = jnp.sum(counted.astype(jnp.float32), keepdims=True)


def _round_up(x, m):
    return ((x + m - 1) // m) * m


def _vmem_config():
    """Return (vmem_limit_bytes, per-X-buffer budget in f32-equivalent bytes).

    The budget is counted in f32 bytes so the in-kernel f32 upcast of a bf16
    tile and the exp() intermediate are covered too:
      v7x   : 64 MiB physical VMEM  -> 10 MiB tiles, 48 MiB scoped limit
      v5e/v6e: 128 MiB physical VMEM -> 16 MiB tiles, 96 MiB scoped limit
    """
    try:
        cap = int(pltpu.get_tpu_info().vmem_capacity_bytes)
    except Exception:
        cap = 64 * 1024 * 1024          # assume the smallest (v7x per-core)
    if cap >= 96 * 1024 * 1024:
        return 96 * 1024 * 1024, 16 * 1024 * 1024
    return 48 * 1024 * 1024, 10 * 1024 * 1024


def _choose_tiles(n, c, f32_budget):
    """Pick (tile_n, tile_c) so one X tile is <= f32_budget (f32-equivalent)."""
    max_tile_c = 2048                     # multiple of 128 when chunking C
    tile_c = c if c <= max_tile_c else max_tile_c
    rows_fit = max(8, (f32_budget // (tile_c * 4)) // 8 * 8)
    tile_n = min(_round_up(n, 8), rows_fit, 8192)
    return tile_n, tile_c


def generic_loss(x, target, *, ignore_index=-100, reduction='elementwise_mean',
                 tile_n=None, tile_c=None):
    """JAX wrapper matching _GenericLoss.forward(X, target)."""
    assert reduction in ['elementwise_mean', 'sum', 'none']
    n, c = x.shape
    tgt2d = target.astype(jnp.int32).reshape(n, 1)

    vmem_limit, f32_budget = _vmem_config()
    auto_n, auto_c = _choose_tiles(n, c, f32_budget)
    tile_n = auto_n if tile_n is None else tile_n
    tile_c = auto_c if tile_c is None else tile_c

    grid_rows = pl.cdiv(n, tile_n)
    grid_cols = pl.cdiv(c, tile_c)

    if reduction == 'none':
        out_shape = jax.ShapeDtypeStruct((grid_rows * tile_n, 1), jnp.float32)
        out_specs = pl.BlockSpec((tile_n, 1), lambda i, j: (i, 0))
    else:
        # Per-row-tile partial loss sums and valid-row counts; the (tiny)
        # combine happens in plain JAX below so the row grid axis stays
        # "parallel" across TensorCores.
        out_shape = (jax.ShapeDtypeStruct((grid_rows, 1, 1), jnp.float32),
                     jax.ShapeDtypeStruct((grid_rows, 1, 1), jnp.float32))
        out_specs = (pl.BlockSpec((None, 1, 1), lambda i, j: (i, 0, 0)),
                     pl.BlockSpec((None, 1, 1), lambda i, j: (i, 0, 0)))

    kernel = functools.partial(
        _generic_loss_kernel,
        n_rows=n, n_classes=c, tile_n=tile_n, tile_c=tile_c,
        ignore_index=ignore_index, reduction=reduction)

    out = pl.pallas_call(
        kernel,
        out_shape=out_shape,
        grid_spec=pltpu.PrefetchScalarGridSpec(
            num_scalar_prefetch=0,
            grid=(grid_rows, grid_cols),
            in_specs=[
                pl.BlockSpec((tile_n, tile_c), lambda i, j: (i, j)),  # X tile
                pl.BlockSpec((tile_n, 1), lambda i, j: (i, 0)),       # targets
            ],
            out_specs=out_specs,
            scratch_shapes=[
                pltpu.VMEM((tile_n, 1), jnp.float32),   # running max  m
                pltpu.VMEM((tile_n, 1), jnp.float32),   # running sumexp l
                pltpu.VMEM((tile_n, 1), jnp.float32),   # picked target logit
            ]),
        compiler_params=pltpu.CompilerParams(
            # Row tiles are independent on every path -> shard across both
            # v7x TensorCores; class chunks carry the online-lse state.
            dimension_semantics=("parallel", "arbitrary"),
            vmem_limit_bytes=vmem_limit),
    )(x, tgt2d)

    if reduction == 'none':
        return out[:n, 0]

    psum, pcnt = out
    total = jnp.sum(psum)
    if reduction == 'sum':
        return total
    # 'elementwise_mean': divide by #non-ignored rows (== n when
    # ignore_index < 0).  If every row is ignored this is inf/NaN, same
    # edge case as the PyTorch reference.
    return total / jnp.sum(pcnt)


if __name__ == "__main__":
    key = jax.random.PRNGKey(0)
    kx, kt, kx2, kt2 = jax.random.split(key, 4)

    # ---- small canonical shapes --------------------------------------------
    N, C = 8, 32
    x = jax.random.normal(kx, (N, C), dtype=jnp.float32)
    target = jax.random.randint(kt, (N,), 0, C, dtype=jnp.int32)

    loss_mean = generic_loss(x, target)                                   # default
    loss_sum = generic_loss(x, target, ignore_index=0, reduction='sum')
    loss_none = generic_loss(x, target, ignore_index=0, reduction='none')
    loss_bf16 = generic_loss(x.astype(jnp.bfloat16), target)              # bf16 DMA path

    # ---- ragged multi-tile path: 3x3 grid, partial last row tile & C chunk --
    N2, C2 = 44, 300
    x2 = jax.random.normal(kx2, (N2, C2), dtype=jnp.float32)
    t2 = jax.random.randint(kt2, (N2,), 0, C2, dtype=jnp.int32)
    out2_mean = generic_loss(x2, t2, ignore_index=3,
                             reduction='elementwise_mean', tile_n=16, tile_c=128)
    out2_sum = generic_loss(x2, t2, ignore_index=3,
                            reduction='sum', tile_n=16, tile_c=128)
    out2_none = generic_loss(x2, t2, ignore_index=3,
                             reduction='none', tile_n=16, tile_c=128)

    jax.block_until_ready((loss_mean, loss_sum, loss_none, loss_bf16,
                           out2_mean, out2_sum, out2_none))

    # ---- plain-JAX references -----------------------------------------------
    lse = jax.scipy.special.logsumexp(x, axis=1)
    per = lse - x[jnp.arange(N), target]
    ref_mean = per.sum() / float(N)
    ign = target == 0
    per_ign = jnp.where(ign, 0.0, per)
    ref_sum = per_ign.sum()

    lse2 = jax.scipy.special.logsumexp(x2, axis=1)
    per2 = lse2 - x2[jnp.arange(N2), t2]
    ign2 = t2 == 3
    per2m = jnp.where(ign2, 0.0, per2)
    ref2_mean = per2m.sum() / (N2 - ign2.sum()).astype(jnp.float32)
    ref2_sum = per2m.sum()

    assert jnp.allclose(loss_mean, ref_mean, atol=1e-5), (loss_mean, ref_mean)
    assert jnp.allclose(loss_sum, ref_sum, atol=1e-5), (loss_sum, ref_sum)
    assert jnp.allclose(loss_none, per_ign, atol=1e-5)
    assert jnp.allclose(loss_bf16, ref_mean, atol=1e-1), (loss_bf16, ref_mean)
    assert jnp.allclose(out2_mean, ref2_mean, atol=1e-4), (out2_mean, ref2_mean)
    assert jnp.allclose(out2_sum, ref2_sum, atol=1e-3), (out2_sum, ref2_sum)
    assert jnp.allclose(out2_none, per2m, atol=1e-4)

    print("KERNEL_OK")
</pallas_src>

<mosaic_0001>
module attributes {stable_mosaic.version = 11 : i64} {
  func.func @_generic_loss_kernel(%arg0: i32, %arg1: i32, %arg2: memref<8x32xf32, #tpu.memory_space<vmem>>, %arg3: memref<8x1xi32, #tpu.memory_space<vmem>>, %arg4: memref<1x1x1xf32, #tpu.memory_space<vmem>>, %arg5: memref<1x1x1xf32, #tpu.memory_space<vmem>>, %arg6: memref<8x1xf32, #tpu.memory_space<vmem>>, %arg7: memref<8x1xf32, #tpu.memory_space<vmem>>, %arg8: memref<8x1xf32, #tpu.memory_space<vmem>>) attributes {dimension_semantics = [#tpu.dimension_semantics<parallel>, #tpu.dimension_semantics<arbitrary>], iteration_bounds = array<i64: 1, 1>, scalar_prefetch = 0 : i64, scratch_operands = 3 : i64, tpu.core_type = #tpu.core_type<tc>, window_params = [{transform_indices = @transform_0, window_bounds = array<i64: 8, 32>}, {transform_indices = @transform_1, window_bounds = array<i64: 8, 1>}, {transform_indices = @transform_2, window_bounds = array<i64: 1, 1, 1>}, {transform_indices = @transform_3, window_bounds = array<i64: 1, 1, 1>}]} {
    %c0_i32 = arith.constant 0 : i32
    %0 = arith.cmpi eq, %arg1, %c0_i32 : i32
    %1 = arith.extui %0 : i1 to i32
    %c0_i32_0 = arith.constant 0 : i32
    %2 = arith.cmpi ne, %1, %c0_i32_0 : i32
    scf.if %2 {
      %cst_23 = arith.constant 0xFF800000 : f32
      %39 = vector.broadcast %cst_23 : f32 to vector<8x1xf32>
      %c0_24 = arith.constant 0 : index
      %c0_25 = arith.constant 0 : index
      %40 = vector.load %arg6[%c0_24, %c0_25] : memref<8x1xf32, #tpu.memory_space<vmem>>, vector<8x1xf32>
      tpu.vector_store %arg6[%c0_24, %c0_25], %39 {strides = array<i32>} : memref<8x1xf32, #tpu.memory_space<vmem>>, vector<8x1xf32>,
      %cst_26 = arith.constant 0.000000e+00 : f32
      %41 = vector.broadcast %cst_26 : f32 to vector<8x1xf32>
      %c0_27 = arith.constant 0 : index
      %c0_28 = arith.constant 0 : index
      %42 = vector.load %arg7[%c0_27, %c0_28] : memref<8x1xf32, #tpu.memory_space<vmem>>, vector<8x1xf32>
      tpu.vector_store %arg7[%c0_27, %c0_28], %41 {strides = array<i32>} : memref<8x1xf32, #tpu.memory_space<vmem>>, vector<8x1xf32>,
      %cst_29 = arith.constant 0.000000e+00 : f32
      %43 = vector.broadcast %cst_29 : f32 to vector<8x1xf32>
      %c0_30 = arith.constant 0 : index
      %c0_31 = arith.constant 0 : index
      %44 = vector.load %arg8[%c0_30, %c0_31] : memref<8x1xf32, #tpu.memory_space<vmem>>, vector<8x1xf32>
      tpu.vector_store %arg8[%c0_30, %c0_31], %43 {strides = array<i32>} : memref<8x1xf32, #tpu.memory_space<vmem>>, vector<8x1xf32>,
    } else {
    }
    %c0 = arith.constant 0 : index
    %c0_1 = arith.constant 0 : index
    %3 = vector.load %arg2[%c0, %c0_1] : memref<8x32xf32, #tpu.memory_space<vmem>>, vector<8x32xf32>
    %c0_2 = arith.constant 0 : index
    %c0_3 = arith.constant 0 : index
    %4 = vector.load %arg3[%c0_2, %c0_3] : memref<8x1xi32, #tpu.memory_space<vmem>>, vector<8x1xi32>
    %5 = tpu.iota {dimensions = array<i32: 1>} : vector<8x32xi32>
    %c32_i32 = arith.constant 32 : i32
    %6 = arith.muli %arg1, %c32_i32 : i32
    %7 = vector.broadcast %6 : i32 to vector<8x1xi32>
    %8 = arith.subi %4, %7 : vector<8x1xi32>
    %9 = vector.broadcast %8 : vector<8x1xi32> to vector<8x32xi32>
    %10 = arith.cmpi eq, %5, %9 : vector<8x32xi32>
    %c0_4 = arith.constant 0 : index
    %c0_5 = arith.constant 0 : index
    %11 = vector.load %arg8[%c0_4, %c0_5] : memref<8x1xf32, #tpu.memory_space<vmem>>, vector<8x1xf32>
    %c0_i32_6 = arith.constant 0 : i32
    %12 = arith.sitofp %c0_i32_6 : i32 to f32
    %13 = vector.broadcast %12 : f32 to vector<8x32xf32>
    %14 = arith.select %10, %3, %13 : vector<8x32xi1>, vector<8x32xf32>
    %cst = arith.constant dense<0.000000e+00> : vector<8xf32>
    %15 = vector.multi_reduction <add>, %14, %cst [1] : vector<8x32xf32> to vector<8xf32>
    %16 = vector.shape_cast %15 : vector<8xf32> to vector<8x1xf32>
    %17 = arith.addf %11, %16 : vector<8x1xf32>
    %c0_7 = arith.constant 0 : index
    %c0_8 = arith.constant 0 : index
    %18 = vector.load %arg8[%c0_7, %c0_8] : memref<8x1xf32, #tpu.memory_space<vmem>>, vector<8x1xf32>
    tpu.vector_store %arg8[%c0_7, %c0_8], %17 {strides = array<i32>} : memref<8x1xf32, #tpu.memory_space<vmem>>, vector<8x1xf32>,
    %cst_9 = arith.constant dense<0xFF800000> : vector<8xf32>
    %19 = vector.multi_reduction <maximumf>, %3, %cst_9 [1] : vector<8x32xf32> to vector<8xf32>
    %20 = vector.shape_cast %19 : vector<8xf32> to vector<8x1xf32>
    %c0_10 = arith.constant 0 : index
    %c0_11 = arith.constant 0 : index
    %21 = vector.load %arg6[%c0_10, %c0_11] : memref<8x1xf32, #tpu.memory_space<vmem>>, vector<8x1xf32>
    %22 = arith.maximumf %21, %20 : vector<8x1xf32>
    %c0_12 = arith.constant 0 : index
    %c0_13 = arith.constant 0 : index
    %23 = vector.load %arg7[%c0_12, %c0_13] : memref<8x1xf32, #tpu.memory_space<vmem>>, vector<8x1xf32>
    %c0_14 = arith.constant 0 : index
    %c0_15 = arith.constant 0 : index
    %24 = vector.load %arg6[%c0_14, %c0_15] : memref<8x1xf32, #tpu.memory_space<vmem>>, vector<8x1xf32>
    %25 = arith.subf %24, %22 : vector<8x1xf32>
    %26 = math.exp %25 : vector<8x1xf32>
    %27 = arith.mulf %23, %26 : vector<8x1xf32>
    %28 = vector.broadcast %22 : vector<8x1xf32> to vector<8x32xf32>
    %29 = arith.subf %3, %28 : vector<8x32xf32>
    %30 = math.exp %29 : vector<8x32xf32>
    %cst_16 = arith.constant dense<0.000000e+00> : vector<8xf32>
    %31 = vector.multi_reduction <add>, %30, %cst_16 [1] : vector<8x32xf32> to vector<8xf32>
    %32 = vector.shape_cast %31 : vector<8xf32> to vector<8x1xf32>
    %33 = arith.addf %27, %32 : vector<8x1xf32>
    %c0_17 = arith.constant 0 : index
    %c0_18 = arith.constant 0 : index
    %34 = vector.load %arg7[%c0_17, %c0_18] : memref<8x1xf32, #tpu.memory_space<vmem>>, vector<8x1xf32>
    tpu.vector_store %arg7[%c0_17, %c0_18], %33 {strides = array<i32>} : memref<8x1xf32, #tpu.memory_space<vmem>>, vector<8x1xf32>,
    %c0_19 = arith.constant 0 : index
    %c0_20 = arith.constant 0 : index
    %35 = vector.load %arg6[%c0_19, %c0_20] : memref<8x1xf32, #tpu.memory_space<vmem>>, vector<8x1xf32>
    tpu.vector_store %arg6[%c0_19, %c0_20], %22 {strides = array<i32>} : memref<8x1xf32, #tpu.memory_space<vmem>>, vector<8x1xf32>,
    %c0_i32_21 = arith.constant 0 : i32
    %36 = arith.cmpi eq, %arg1, %c0_i32_21 : i32
    %37 = arith.extui %36 : i1 to i32
    %c0_i32_22 = arith.constant 0 : i32
    %38 = arith.cmpi ne, %37, %c0_i32_22 : i32
    scf.if %38 {
      %c0_23 = arith.constant 0 : index
      %c0_24 = arith.constant 0 : index
      %39 = vector.load %arg6[%c0_23, %c0_24] : memref<8x1xf32, #tpu.memory_space<vmem>>, vector<8x1xf32>
      %c0_25 = arith.constant 0 : index
      %c0_26 = arith.constant 0 : index
      %40 = vector.load %arg7[%c0_25, %c0_26] : memref<8x1xf32, #tpu.memory_space<vmem>>, vector<8x1xf32>
      %41 = math.log %40 : vector<8x1xf32>
      %42 = arith.addf %39, %41 : vector<8x1xf32>
      %c0_27 = arith.constant 0 : index
      %c0_28 = arith.constant 0 : index
      %43 = vector.load %arg8[%c0_27, %c0_28] : memref<8x1xf32, #tpu.memory_space<vmem>>, vector<8x1xf32>
      %44 = arith.subf %42, %43 : vector<8x1xf32>
      %c8_i32 = arith.constant 8 : i32
      %45 = arith.muli %arg0, %c8_i32 : i32
      %46 = tpu.iota {dimensions = array<i32: 0>} : vector<8x1xi32>
      %47 = vector.broadcast %45 : i32 to vector<8x1xi32>
      %48 = arith.addi %47, %46 : vector<8x1xi32>
      %c8_i32_29 = arith.constant 8 : i32
      %49 = vector.broadcast %c8_i32_29 : i32 to vector<8x1xi32>
      %50 = arith.cmpi slt, %48, %49 : vector<8x1xi32>
      %cst_30 = arith.constant 0.000000e+00 : f32
      %51 = vector.broadcast %cst_30 : f32 to vector<8x1xf32>
      %52 = arith.select %50, %44, %51 : vector<8x1xi1>, vector<8x1xf32>
      %53 = vector.shape_cast %52 : vector<8x1xf32> to vector<1x8x1xf32>
      %cst_31 = arith.constant dense<0.000000e+00> : vector<1xf32>
      %54 = vector.multi_reduction <add>, %53, %cst_31 [1, 2] : vector<1x8x1xf32> to vector<1xf32>
      %55 = vector.shape_cast %54 : vector<1xf32> to vector<1x1x1xf32>
      %56 = vector.extract %55[0, 0, 0] : f32 from vector<1x1x1xf32>
      %57 = vector.broadcast %56 : f32 to vector<1x1xf32>
      %c0_32 = arith.constant 0 : index
      %c0_33 = arith.constant 0 : index
      %c0_34 = arith.constant 0 : index
      %58 = vector.load %arg4[%c0_32, %c0_33, %c0_34] : memref<1x1x1xf32, #tpu.memory_space<vmem>>, vector<1x1x1xf32>
      %59 = vector.shape_cast %58 : vector<1x1x1xf32> to vector<1x1xf32>
      %60 = vector.shape_cast %57 : vector<1x1xf32> to vector<1x1x1xf32>
      tpu.vector_store %arg4[%c0_32, %c0_33, %c0_34], %60 {strides = array<i32>} : memref<1x1x1xf32, #tpu.memory_space<vmem>>, vector<1x1x1xf32>,
      %61 = arith.extui %50 : vector<8x1xi1> to vector<8x1xi32>
      %62 = arith.sitofp %61 : vector<8x1xi32> to vector<8x1xf32>
      %63 = vector.shape_cast %62 : vector<8x1xf32> to vector<1x8x1xf32>
      %cst_35 = arith.constant dense<0.000000e+00> : vector<1xf32>
      %64 = vector.multi_reduction <add>, %63, %cst_35 [1, 2] : vector<1x8x1xf32> to vector<1xf32>
      %65 = vector.shape_cast %64 : vector<1xf32> to vector<1x1x1xf32>
      %66 = vector.extract %65[0, 0, 0] : f32 from vector<1x1x1xf32>
      %67 = vector.broadcast %66 : f32 to vector<1x1xf32>
      %c0_36 = arith.constant 0 : index
      %c0_37 = arith.constant 0 : index
      %c0_38 = arith.constant 0 : index
      %68 = vector.load %arg5[%c0_36, %c0_37, %c0_38] : memref<1x1x1xf32, #tpu.memory_space<vmem>>, vector<1x1x1xf32>
      %69 = vector.shape_cast %68 : vector<1x1x1xf32> to vector<1x1xf32>
      %70 = vector.shape_cast %67 : vector<1x1xf32> to vector<1x1x1xf32>
      tpu.vector_store %arg5[%c0_36, %c0_37, %c0_38], %70 {strides = array<i32>} : memref<1x1x1xf32, #tpu.memory_space<vmem>>, vector<1x1x1xf32>,
    } else {
    }
    return
  }
  func.func @transform_0(%arg0: i32, %arg1: i32) -> (i32, i32) {
    %c0_i32 = arith.constant 0 : i32
    return %arg0, %arg1 : i32, i32
  }
  func.func @transform_1(%arg0: i32, %arg1: i32) -> (i32, i32) {
    %c0_i32 = arith.constant 0 : i32
    %c0_i32_0 = arith.constant 0 : i32
    return %arg0, %c0_i32 : i32, i32
  }
  func.func @transform_2(%arg0: i32, %arg1: i32) -> (i32, i32, i32) {
    %c0_i32 = arith.constant 0 : i32
    %c0_i32_0 = arith.constant 0 : i32
    %c0_i32_1 = arith.constant 0 : i32
    return %arg0, %c0_i32, %c0_i32_0 : i32, i32, i32
  }
  func.func @transform_3(%arg0: i32, %arg1: i32) -> (i32, i32, i32) {
    %c0_i32 = arith.constant 0 : i32
    %c0_i32_0 = arith.constant 0 : i32
    %c0_i32_1 = arith.constant 0 : i32
    return %arg0, %c0_i32, %c0_i32_0 : i32, i32, i32
  }
}

</mosaic_0001>

<llo_original>
// kernel: tpu_custom_call.1
$region0: #{tpu_custom_call.1}
  #allocation0 [shape = 'u32[]', space=smem, size = 0x4, offset = 0x4, fixed_abs, tag = 'smem constant byte address 0x4 - core index']
  #allocation1 [shape = 'u32[72,128]{1,0:T(1,128)}', space=vmem, size = 0x9000, scoped, tag = 'internal scratch']
  #allocation2 [shape = 'f32[8,1]{1,0:T(8,128)}', space=vmem, size = 0x1000, scoped, tag = 'scratch operand']
  #allocation3 [shape = 'f32[8,1]{1,0:T(8,128)}', space=vmem, size = 0x1000, scoped, tag = 'scratch operand']
  #allocation4 [shape = 'f32[8,1]{1,0:T(8,128)}', space=vmem, size = 0x1000, scoped, tag = 'scratch operand']
  %s0 = inlined_call_operand.vmem [shape: f32[8,32], index: 0, kind: input, shape index: {}]
  %s1 = inlined_call_operand.vmem [shape: s32[8,1], index: 1, kind: input, shape index: {}]
  %s2 = inlined_call_operand.hbm [shape: f32[1,1,1], index: 2, kind: output, shape index: {0}]
  %s3 = inlined_call_operand.hbm [shape: f32[1,1,1], index: 3, kind: output, shape index: {1}]
  %4 = xla_tuple %s2, %s3
  %s5 = sld [smem:[#allocation0]]
  $region34: #{tpu_custom_call.1} parent=0
    _
  %s7 = ssub.s32 1, %s5
  %s8 = scalar_select 0, %s7, %s5
  $region1: #{tpu_custom_call.1} parent=0
    #allocation5 [shape = 'u8[512]{0}', space=vmem, size = 0x400, scoped, tag = 'output window, operand 0, single buffered']
    #allocation6 [shape = 's32[1]{0}', space=sflag, size = 0x4, scoped, tag = 'scoped memory for tpu_custom_call.1']
    #allocation7 [shape = 'u8[512]{0}', space=vmem, size = 0x400, scoped, tag = 'output window, operand 1, single buffered']
    #allocation8 [shape = 's32[1]{0}', space=sflag, size = 0x4, scoped, tag = 'scoped memory for tpu_custom_call.1']
    %9 = vsyncpa [#allocation6], 0
    %10 = vsyncpa [#allocation8], 0
    // Predicated region
    $region2: #{tpu_custom_call.1} parent=1 // pred_check
      _
    $region3: #{tpu_custom_call.1} parent=1 // pred_check_branch
      %12 = sbr.rel (0) target = $region5
    $region4: #{tpu_custom_call.1} parent=1 // pred_region
      _
    $region5: #{tpu_custom_call.1} parent=1 // pred_fallthru
      _
    // Predicated region
    $region6: #{tpu_custom_call.1} parent=1 // pred_check
      _
    $region7: #{tpu_custom_call.1} parent=1 // pred_check_branch
      %14 = sbr.rel (0) target = $region9
    $region8: #{tpu_custom_call.1} parent=1 // pred_region
      _
    $region9: #{tpu_custom_call.1} parent=1 // pred_fallthru
      _
    %p15 = scmp.eq.s32.totalorder 0, 0
    // Predicated region
    $region10: #{tpu_custom_call.1} parent=1 // pred_check
      %p16 = pneg %p15
    $region11: #{tpu_custom_call.1} parent=1 // pred_check_branch
      %18 = sbr.rel (%p16) target = $region13
    $region12: #{tpu_custom_call.1} parent=1 // pred_region
      %vm19 = vcmask 7168
      %20 = vst.msk [vmem:[#allocation2] sm:$0xff] %vm19, -inf
      %21 = vst.msk [vmem:[#allocation3] sm:$0xff] %vm19, 0.0
      %22 = vst.msk [vmem:[#allocation4] sm:$0xff] %vm19, 0.0
    $region13: #{tpu_custom_call.1} parent=1 // pred_fallthru
      _
    %v23 = vld [vmem:[%s0] sm:$0xff]
    %v24 = vld [vmem:[%s1] sm:$0xff]
    %v25 = vlaneseq
    %v26 = vand.u32 %v25, 127
    %s27 = smul.u32 0, 32
    %v28 = vstv %s27
    %v29 = vsub.s32 %v24, %v28
    %30 = vset.pattern.permute.xlu0 0
    %31 = vperm.xlu0 %30, %v29
    %v32 = vpop.permute.xlu0 %31
    %vm33 = vcmp.eq.s32.totalorder %v26, %v32
    %v34 = vld [vmem:[#allocation4] sm:$0xff]
    %v35 = vsel %vm33, %v23, 0.0
    %vm36 = vcmask 261120
    %v37 = vsel %vm36, %v35, 0.0
    %38 = vadd.xlane.f32.xlu0 %v37
    %v39 = vpop.xlane.xlu0 %38
    %v40 = vadd.f32 %v34, %v39
    %vm41 = vcmask 7168
    %42 = vst.msk [vmem:[#allocation4] sm:$0xff] %vm41, %v40
    %v43 = vsel %vm36, %v23, -inf
    %44 = vmax.xlane.f32.xlu0 %v43
    %v45 = vpop.xlane.xlu0 %44
    %v46 = vld [vmem:[#allocation2] sm:$0xff]
    %v47 = vmax.f32 %v46, %v45
    %v48 = vld [vmem:[#allocation3] sm:$0xff]
    %v49 = vsub.f32 %v46, %v47
    %v50 = vmul.f32 %v49, 1.442695
    %v51 = vpow.pop %v50
    %v52 = vmul.f32 %v48, %v51
    %54 = vset.pattern.permute.xlu0 0
    %55 = vperm.xlu0 %54, %v47
    %v56 = vpop.permute.xlu0 %55
    %v58 = vsub.f32 %v23, %v56
    %v59 = vmul.f32 %v58, 1.442695
    %v60 = vpow.pop %v59
    %v61 = vsel %vm36, %v60, 0.0
    %62 = vadd.xlane.f32.xlu0 %v61
    %v63 = vpop.xlane.xlu0 %62
    %v64 = vadd.f32 %v52, %v63
    %65 = vst.msk [vmem:[#allocation3] sm:$0xff] %vm41, %v64
    %66 = vst.msk [vmem:[#allocation2] sm:$0xff] %vm41, %v47
    // Predicated region
    $region14: #{tpu_custom_call.1} parent=1 // pred_check
      %p67 = pneg %p15
    $region15: #{tpu_custom_call.1} parent=1 // pred_check_branch
      %69 = sbr.rel (%p67) target = $region17
    $region16: #{tpu_custom_call.1} parent=1 // pred_region
      %v70 = vld [vmem:[#allocation2] sm:$0xff]
      %v71 = vld [vmem:[#allocation3] sm:$0xff]
      %v72 = vlog2.pop %v71
      %v73 = vmul.f32 %v72, 0.6931472
      %v74 = vadd.f32 %v70, %v73
      %v75 = vld [vmem:[#allocation4] sm:$0xff]
      %v76 = vsub.f32 %v74, %v75
      %s77 = smul.u32 0, 8
      %v78 = vlaneseq
      %v79 = vshrl.u32 %v78, 7
      %v80 = vstv %s77
      %v81 = vadd.s32 %v80, %v79
      %vm82 = vcmp.lt.s32.totalorder %v81, 8
      %v83 = vsel %vm82, %v76, 0.0
      %v84 = vsel %vm41, %v83, 0.0
      %85 = vadd.xlane.f32.xlu0 %v84
      %v86 = vpop.xlane.xlu0 %85
      %v87 = vrot.slane %v86, 4
      %v88 = vadd.f32 %v86, %v87
      %v89 = vrot.slane %v88, 2
      %v90 = vadd.f32 %v88, %v89
      %v91 = vrot.slane %v90, 1
      %v92 = vadd.f32 %v90, %v91
      %s93 = vtos %v92
      %v94 = vstv %s93
      %vm95 = vcmask 0
      %96 = vst.msk [vmem:[#allocation5] sm:$0x1] %vm95, %v94
      %v97 = vsel %vm82, 1, 0
      %v98 = vcvt.s32.f32 %v97
      %v99 = vsel %vm41, %v98, 0.0
      %100 = vadd.xlane.f32.xlu0 %v99
      %v101 = vpop.xlane.xlu0 %100
      %v102 = vrot.slane %v101, 4
      %v103 = vadd.f32 %v101, %v102
      %v104 = vrot.slane %v103, 2
      %v105 = vadd.f32 %v103, %v104
      %v106 = vrot.slane %v105, 1
      %v107 = vadd.f32 %v105, %v106
      %s108 = vtos %v107
      %v109 = vstv %s108
      %110 = vst.msk [vmem:[#allocation7] sm:$0x1] %vm95, %v109
    $region17: #{tpu_custom_call.1} parent=1 // pred_fallthru
      _
    // Predicated region
    $region18: #{tpu_custom_call.1} parent=1 // pred_check
      _
    $region19: #{tpu_custom_call.1} parent=1 // pred_check_branch
      %112 = sbr.rel (0) target = $region21
    $region20: #{tpu_custom_call.1} parent=1 // pred_region
      %114 = vsyncadd [#allocation6], 0
      %s116 = sshll.u32 [#allocation5], 4
      %s117 = int_to_ptr.vmem [resolvable:$true] %s116
      %s118 = sshll.u32 %s2, 4
      %s119 = int_to_ptr.hbm [resolvable:$true] %s118
      %121 = dma.vmem_to_hbm [thread:$0]  %s117, 16, %s119, [#allocation6]
    $region21: #{tpu_custom_call.1} parent=1 // pred_fallthru
      _
    // Predicated region
    $region22: #{tpu_custom_call.1} parent=1 // pred_check
      _
    $region23: #{tpu_custom_call.1} parent=1 // pred_check_branch
      %123 = sbr.rel (0) target = $region25
    $region24: #{tpu_custom_call.1} parent=1 // pred_region
      %125 = vsyncadd [#allocation8], 0
      %s127 = sshll.u32 [#allocation7], 4
      %s128 = int_to_ptr.vmem [resolvable:$true] %s127
      %s129 = sshll.u32 %s3, 4
      %s130 = int_to_ptr.hbm [resolvable:$true] %s129
      %132 = dma.vmem_to_hbm [thread:$0]  %s128, 16, %s130, [#allocation8]
    $region25: #{tpu_custom_call.1} parent=1 // pred_fallthru
      _
    // Predicated region
    $region26: #{tpu_custom_call.1} parent=1 // pred_check
      _
    $region27: #{tpu_custom_call.1} parent=1 // pred_check_branch
      %134 = sbr.rel (0) target = $region29
    $region28: #{tpu_custom_call.1} parent=1 // pred_region
      %136 = dma.done [#allocation6], 16
    $region29: #{tpu_custom_call.1} parent=1 // pred_fallthru
      _
    // Predicated region
    $region30: #{tpu_custom_call.1} parent=1 // pred_check
      _
    $region31: #{tpu_custom_call.1} parent=1 // pred_check_branch
      %138 = sbr.rel (0) target = $region33
    $region32: #{tpu_custom_call.1} parent=1 // pred_region
      %140 = dma.done [#allocation8], 16
    $region33: #{tpu_custom_call.1} parent=1 // pred_fallthru
      _
    %141 = vsyncpa [#allocation6], 1
    %142 = vsyncpa [#allocation8], 1

</llo_original>
